<compile_context>
chip_gen: v6e
topology: v6e:2x2x1
jax: 0.10.0
libtpu: 0.0.40
codegen_flags: <defaults>
</compile_context>

<pallas_src>
import functools

import jax
import jax.numpy as jnp
from jax.experimental import pallas as pl
from jax.experimental.pallas import tpu as pltpu

EPS = 1e-12


def _sample_kernel(temp_ref, mu_ref, log_sigma_ref, log_alpha_ref,
                   std_z_ref, unif_ref, out_ref, *, d_norm):
    """One batch-tile: fused reparam-Gaussian + Gumbel-softmax + concat."""
    mu = mu_ref[...].astype(jnp.float32)
    log_sigma = log_sigma_ref[...].astype(jnp.float32)
    log_alpha = log_alpha_ref[...].astype(jnp.float32)
    std_z = std_z_ref[...].astype(jnp.float32)
    unif = unif_ref[...].astype(jnp.float32)

    # --- Gaussian reparameterization: mu + exp(log_sigma) * N(0,1) ----------
    norm_part = mu + jnp.exp(log_sigma) * std_z

    # --- Gumbel-softmax over the channel axis --------------------------------
    gumbel = -jnp.log(-jnp.log(unif + EPS) + EPS)
    inv_temp = 1.0 / temp_ref[0]
    logit = (log_alpha + gumbel) * inv_temp

    # Numerically-stable softmax along the last (lane) axis.  Exact divide:
    # the kernel is HBM-bound, so the VPU divide is free and the
    # normalization is exact (no approx-reciprocal 1e-3 error).
    m = jnp.max(logit, axis=1, keepdims=True)
    e = jnp.exp(logit - m)
    denom = jnp.sum(e, axis=1, keepdims=True)
    disc_part = e / denom

    # --- concat([norm, disc], dim=1) via two sliced stores --------------------
    out_ref[:, :d_norm] = norm_part.astype(out_ref.dtype)
    out_ref[:, d_norm:] = disc_part.astype(out_ref.dtype)


def _round_up(x, m):
    return ((x + m - 1) // m) * m


def _pick_batch_tile(batch):
    # Cap keeps double-buffered in+out VMEM (6 arrays x 512 B/row x 2 buffers)
    # ~12.6 MiB at tb=2048 -- under v5e's 16 MiB default scoped-VMEM limit
    # (v6e/v7x defaults are larger and are not a constraint here).
    tb_cap = 2048
    if batch <= 32:
        return batch                     # tiny / demo sizes: single grid step
    # >= 4 grid steps so the "parallel" batch axis feeds both v7x TensorCores
    # (and megacore on v5e/v6e), tiles a multiple of 8 sublanes.
    return min(tb_cap, max(8, _round_up(pl.cdiv(batch, 4), 8)))


def sample_forward(norm_mean, norm_log_sigma, disc_log_alpha, *, temperature,
                   rng_key):
    """JAX/Pallas equivalent of Sample.forward (disc_label=None path)."""
    assert norm_mean.shape == norm_log_sigma.shape
    batch, d_norm = norm_mean.shape
    _, d_disc = disc_log_alpha.shape
    d_out = d_norm + d_disc

    # Noise generated with the standard (portable) JAX RNG; everything
    # downstream of the noise draw is fused inside the kernel.
    k_norm, k_unif = jax.random.split(rng_key)
    std_z = jax.random.normal(k_norm, (batch, d_norm), jnp.float32)
    unif = jax.random.uniform(k_unif, (batch, d_disc), jnp.float32)

    # Runtime scalar (SMEM via scalar prefetch): annealing T never recompiles.
    temp_arr = jnp.asarray(temperature, dtype=jnp.float32).reshape(1)

    tb = _pick_batch_tile(batch)
    grid = (pl.cdiv(batch, tb),)

    def row_spec(d):
        return pl.BlockSpec((tb, d), lambda i, *_: (i, 0))

    kernel = functools.partial(_sample_kernel, d_norm=d_norm)

    out2d = pl.pallas_call(
        kernel,
        out_shape=jax.ShapeDtypeStruct((batch, d_out), norm_mean.dtype),
        grid_spec=pltpu.PrefetchScalarGridSpec(
            num_scalar_prefetch=1,          # temperature -> SMEM
            grid=grid,
            in_specs=[
                row_spec(d_norm),           # norm_mean
                row_spec(d_norm),           # norm_log_sigma
                row_spec(d_disc),           # disc_log_alpha
                row_spec(d_norm),           # std_z (standard normal noise)
                row_spec(d_disc),           # unif  (uniform noise for Gumbel)
            ],
            out_specs=row_spec(d_out),
        ),
        compiler_params=pltpu.CompilerParams(
            dimension_semantics=("parallel",)),
    )(temp_arr, norm_mean, norm_log_sigma, disc_log_alpha, std_z, unif)

    # Final view(batch, dim, 1, 1) -- pure layout glue, stays in plain JAX.
    return out2d.reshape(batch, d_out, 1, 1)


if __name__ == "__main__":
    key = jax.random.PRNGKey(0)
    k_mu, k_ls, k_la, k_sample = jax.random.split(key, 4)

    batch, d_norm, d_disc = 8, 32, 16
    temperature = 0.67

    norm_mean = jax.random.normal(k_mu, (batch, d_norm), jnp.float32)
    norm_log_sigma = 0.1 * jax.random.normal(k_ls, (batch, d_norm), jnp.float32)
    disc_log_alpha = jax.random.normal(k_la, (batch, d_disc), jnp.float32)

    out = sample_forward(norm_mean, norm_log_sigma, disc_log_alpha,
                         temperature=temperature, rng_key=k_sample)
    out = jax.block_until_ready(out)

    assert out.shape == (batch, d_norm + d_disc, 1, 1)
    assert bool(jnp.all(jnp.isfinite(out)))

    # Pure-JAX reference using the same noise draws (replicates the wrapper's
    # key split), compared element-wise against the kernel output.
    k_norm, k_unif = jax.random.split(k_sample)
    std_z = jax.random.normal(k_norm, (batch, d_norm), jnp.float32)
    unif = jax.random.uniform(k_unif, (batch, d_disc), jnp.float32)
    ref_norm = norm_mean + jnp.exp(norm_log_sigma) * std_z
    gumbel = -jnp.log(-jnp.log(unif + EPS) + EPS)
    ref_disc = jax.nn.softmax((disc_log_alpha + gumbel) / temperature, axis=1)
    ref = jnp.concatenate([ref_norm, ref_disc], axis=1).reshape(
        batch, d_norm + d_disc, 1, 1)
    assert bool(jnp.allclose(out, ref, rtol=1e-5, atol=1e-5)), \
        float(jnp.max(jnp.abs(out - ref)))

    # Sanity: the discrete slice is an exact softmax (rows sum to 1).
    disc = out[:, d_norm:, 0, 0]
    assert bool(jnp.all(disc >= 0.0))
    assert bool(jnp.allclose(jnp.sum(disc, axis=1), 1.0, atol=1e-5))

    print("KERNEL_OK")
</pallas_src>

<mosaic_0001>
module attributes {stable_mosaic.version = 11 : i64} {
  func.func @_sample_kernel(%arg0: i32, %arg1: memref<1xf32, #tpu.memory_space<smem>>, %arg2: memref<8x32xf32, #tpu.memory_space<vmem>>, %arg3: memref<8x32xf32, #tpu.memory_space<vmem>>, %arg4: memref<8x16xf32, #tpu.memory_space<vmem>>, %arg5: memref<8x32xf32, #tpu.memory_space<vmem>>, %arg6: memref<8x16xf32, #tpu.memory_space<vmem>>, %arg7: memref<8x48xf32, #tpu.memory_space<vmem>>) attributes {dimension_semantics = [#tpu.dimension_semantics<parallel>], iteration_bounds = array<i64: 1>, scalar_prefetch = 1 : i64, scratch_operands = 0 : i64, tpu.core_type = #tpu.core_type<tc>, window_params = [{transform_indices = @transform_0, window_bounds = array<i64: 8, 32>}, {transform_indices = @transform_1, window_bounds = array<i64: 8, 32>}, {transform_indices = @transform_2, window_bounds = array<i64: 8, 16>}, {transform_indices = @transform_3, window_bounds = array<i64: 8, 32>}, {transform_indices = @transform_4, window_bounds = array<i64: 8, 16>}, {transform_indices = @transform_5, window_bounds = array<i64: 8, 48>}]} {
    %c0 = arith.constant 0 : index
    %c0_0 = arith.constant 0 : index
    %0 = vector.load %arg2[%c0, %c0_0] : memref<8x32xf32, #tpu.memory_space<vmem>>, vector<8x32xf32>
    %c0_1 = arith.constant 0 : index
    %c0_2 = arith.constant 0 : index
    %1 = vector.load %arg3[%c0_1, %c0_2] : memref<8x32xf32, #tpu.memory_space<vmem>>, vector<8x32xf32>
    %c0_3 = arith.constant 0 : index
    %c0_4 = arith.constant 0 : index
    %2 = vector.load %arg4[%c0_3, %c0_4] : memref<8x16xf32, #tpu.memory_space<vmem>>, vector<8x16xf32>
    %c0_5 = arith.constant 0 : index
    %c0_6 = arith.constant 0 : index
    %3 = vector.load %arg5[%c0_5, %c0_6] : memref<8x32xf32, #tpu.memory_space<vmem>>, vector<8x32xf32>
    %c0_7 = arith.constant 0 : index
    %c0_8 = arith.constant 0 : index
    %4 = vector.load %arg6[%c0_7, %c0_8] : memref<8x16xf32, #tpu.memory_space<vmem>>, vector<8x16xf32>
    %5 = math.exp %1 : vector<8x32xf32>
    %6 = arith.mulf %5, %3 : vector<8x32xf32>
    %7 = arith.addf %0, %6 : vector<8x32xf32>
    %cst = arith.constant 9.99999996E-13 : f32
    %8 = vector.broadcast %cst : f32 to vector<8x16xf32>
    %9 = arith.addf %4, %8 : vector<8x16xf32>
    %10 = math.log %9 : vector<8x16xf32>
    %cst_9 = arith.constant 0.000000e+00 : f32
    %11 = vector.broadcast %cst_9 : f32 to vector<8x16xf32>
    %12 = arith.subf %11, %10 : vector<8x16xf32>
    %cst_10 = arith.constant 9.99999996E-13 : f32
    %13 = vector.broadcast %cst_10 : f32 to vector<8x16xf32>
    %14 = arith.addf %12, %13 : vector<8x16xf32>
    %15 = math.log %14 : vector<8x16xf32>
    %cst_11 = arith.constant 0.000000e+00 : f32
    %16 = vector.broadcast %cst_11 : f32 to vector<8x16xf32>
    %17 = arith.subf %16, %15 : vector<8x16xf32>
    %c0_12 = arith.constant 0 : index
    %18 = memref.load %arg1[%c0_12] : memref<1xf32, #tpu.memory_space<smem>>
    %cst_13 = arith.constant 1.000000e+00 : f32
    %19 = arith.divf %cst_13, %18 : f32
    %20 = arith.addf %2, %17 : vector<8x16xf32>
    %21 = vector.broadcast %19 : f32 to vector<8x16xf32>
    %22 = arith.mulf %20, %21 : vector<8x16xf32>
    %cst_14 = arith.constant dense<0xFF800000> : vector<8xf32>
    %23 = vector.multi_reduction <maximumf>, %22, %cst_14 [1] : vector<8x16xf32> to vector<8xf32>
    %24 = vector.shape_cast %23 : vector<8xf32> to vector<8x1xf32>
    %25 = vector.broadcast %24 : vector<8x1xf32> to vector<8x16xf32>
    %26 = arith.subf %22, %25 : vector<8x16xf32>
    %27 = math.exp %26 : vector<8x16xf32>
    %cst_15 = arith.constant dense<0.000000e+00> : vector<8xf32>
    %28 = vector.multi_reduction <add>, %27, %cst_15 [1] : vector<8x16xf32> to vector<8xf32>
    %29 = vector.shape_cast %28 : vector<8xf32> to vector<8x1xf32>
    %30 = vector.broadcast %29 : vector<8x1xf32> to vector<8x16xf32>
    %31 = arith.divf %27, %30 : vector<8x16xf32>
    %c0_16 = arith.constant 0 : index
    %c0_17 = arith.constant 0 : index
    %32 = vector.load %arg7[%c0_16, %c0_17] : memref<8x48xf32, #tpu.memory_space<vmem>>, vector<8x32xf32>
    tpu.vector_store %arg7[%c0_16, %c0_17], %7 {strides = array<i32>} : memref<8x48xf32, #tpu.memory_space<vmem>>, vector<8x32xf32>,
    %c0_18 = arith.constant 0 : index
    %c32 = arith.constant 32 : index
    %33 = vector.load %arg7[%c0_18, %c32] : memref<8x48xf32, #tpu.memory_space<vmem>>, vector<8x16xf32>
    tpu.vector_store %arg7[%c0_18, %c32], %31 {strides = array<i32>} : memref<8x48xf32, #tpu.memory_space<vmem>>, vector<8x16xf32>,
    return
  }
  func.func @transform_0(%arg0: i32, %arg1: memref<1xf32, #tpu.memory_space<smem>>) -> (i32, i32) {
    %c0_i32 = arith.constant 0 : i32
    %c0_i32_0 = arith.constant 0 : i32
    return %arg0, %c0_i32 : i32, i32
  }
  func.func @transform_1(%arg0: i32, %arg1: memref<1xf32, #tpu.memory_space<smem>>) -> (i32, i32) {
    %c0_i32 = arith.constant 0 : i32
    %c0_i32_0 = arith.constant 0 : i32
    return %arg0, %c0_i32 : i32, i32
  }
  func.func @transform_2(%arg0: i32, %arg1: memref<1xf32, #tpu.memory_space<smem>>) -> (i32, i32) {
    %c0_i32 = arith.constant 0 : i32
    %c0_i32_0 = arith.constant 0 : i32
    return %arg0, %c0_i32 : i32, i32
  }
  func.func @transform_3(%arg0: i32, %arg1: memref<1xf32, #tpu.memory_space<smem>>) -> (i32, i32) {
    %c0_i32 = arith.constant 0 : i32
    %c0_i32_0 = arith.constant 0 : i32
    return %arg0, %c0_i32 : i32, i32
  }
  func.func @transform_4(%arg0: i32, %arg1: memref<1xf32, #tpu.memory_space<smem>>) -> (i32, i32) {
    %c0_i32 = arith.constant 0 : i32
    %c0_i32_0 = arith.constant 0 : i32
    return %arg0, %c0_i32 : i32, i32
  }
  func.func @transform_5(%arg0: i32, %arg1: memref<1xf32, #tpu.memory_space<smem>>) -> (i32, i32) {
    %c0_i32 = arith.constant 0 : i32
    %c0_i32_0 = arith.constant 0 : i32
    return %arg0, %c0_i32 : i32, i32
  }
}

</mosaic_0001>

<llo_original>
// kernel: tpu_custom_call.1
$region0: #{tpu_custom_call.1}
  #allocation0 [shape = 'u32[]', space=smem, size = 0x4, offset = 0x4, fixed_abs, tag = 'smem constant byte address 0x4 - core index']
  #allocation1 [shape = 'u32[144,128]{1,0:T(1,128)}', space=vmem, size = 0x12000, scoped, tag = 'internal scratch']
  #allocation2 [shape = 's32[1]{0}', space=sflag, size = 0x4, scoped, tag = 'scoped memory for tpu_custom_call.1']
  #allocation3 [shape = 'f32[1]{0:T(128)S(6)}', space=smem, size = 0x200, scoped, tag = 'prefetched SMEM operand 0']
  %s0 = inlined_call_operand.<no memory space> [shape: f32[1], index: 0, kind: input, shape index: {}]
  %s1 = inlined_call_operand.hbm [shape: f32[8,32], index: 1, kind: input, shape index: {}]
  %s2 = inlined_call_operand.hbm [shape: f32[8,32], index: 2, kind: input, shape index: {}]
  %s3 = inlined_call_operand.hbm [shape: f32[8,16], index: 3, kind: input, shape index: {}]
  %s4 = inlined_call_operand.hbm [shape: f32[8,32], index: 4, kind: input, shape index: {}]
  %s5 = inlined_call_operand.vmem [shape: f32[8,16], index: 5, kind: input, shape index: {}]
  %s6 = inlined_call_operand.hbm [shape: f32[8,48], index: 6, kind: output, shape index: {}]
  %s7 = sld [smem:[#allocation0]]
  $region46: #{tpu_custom_call.1} parent=0
    _
  %s9 = ssub.s32 1, %s7
  %s10 = scalar_select 0, %s9, %s7
  %11 = sst [smem:[#allocation3]] %s0
  $region1: #{tpu_custom_call.1} parent=0
    #allocation4 [shape = 'u8[4096]{0}', space=vmem, size = 0x1000, scoped, tag = 'input window, operand 1, single buffered']
    #allocation5 [shape = 's32[1]{0}', space=sflag, size = 0x4, scoped, tag = 'scoped memory for tpu_custom_call.1']
    #allocation6 [shape = 's32[1]{0}', space=sflag, size = 0x4, scoped, tag = 'scoped memory for tpu_custom_call.1']
    #allocation7 [shape = 'u8[4096]{0}', space=vmem, size = 0x1000, scoped, tag = 'input window, operand 2, single buffered']
    #allocation8 [shape = 's32[1]{0}', space=sflag, size = 0x4, scoped, tag = 'scoped memory for tpu_custom_call.1']
    #allocation9 [shape = 'u8[4096]{0}', space=vmem, size = 0x1000, scoped, tag = 'input window, operand 3, single buffered']
    #allocation10 [shape = 'u8[4096]{0}', space=vmem, size = 0x1000, scoped, tag = 'input window, operand 4, single buffered']
    #allocation11 [shape = 's32[1]{0}', space=sflag, size = 0x4, scoped, tag = 'scoped memory for tpu_custom_call.1']
    #allocation12 [shape = 'u8[4096]{0}', space=vmem, size = 0x1000, scoped, tag = 'output window, operand 0, single buffered']
    %12 = vsyncpa [#allocation5], 0
    %13 = vsyncpa [#allocation8], 0
    %14 = vsyncpa [#allocation11], 0
    %15 = vsyncpa [#allocation6], 0
    // Predicated region
    $region2: #{tpu_custom_call.1} parent=1 // pred_check
      _
    $region3: #{tpu_custom_call.1} parent=1 // pred_check_branch
      %17 = sbr.rel (0) target = $region5
    $region4: #{tpu_custom_call.1} parent=1 // pred_region
      %s19 = ssub.s32 128, 128
      %20 = vsyncadd [#allocation5], %s19
      %s22 = sshll.u32 [#allocation4], 4
      %s23 = int_to_ptr.vmem [resolvable:$true] %s22
      %25 = dma.hbm_to_vmem [thread:$0]  %s1, 128, %s23, [#allocation5]
    $region5: #{tpu_custom_call.1} parent=1 // pred_fallthru
      _
    // Predicated region
    $region6: #{tpu_custom_call.1} parent=1 // pred_check
      _
    $region7: #{tpu_custom_call.1} parent=1 // pred_check_branch
      %27 = sbr.rel (0) target = $region9
    $region8: #{tpu_custom_call.1} parent=1 // pred_region
      %s29 = ssub.s32 128, 128
      %30 = vsyncadd [#allocation8], %s29
      %s32 = sshll.u32 [#allocation7], 4
      %s33 = int_to_ptr.vmem [resolvable:$true] %s32
      %35 = dma.hbm_to_vmem [thread:$0]  %s2, 128, %s33, [#allocation8]
    $region9: #{tpu_custom_call.1} parent=1 // pred_fallthru
      _
    // Predicated region
    $region10: #{tpu_custom_call.1} parent=1 // pred_check
      _
    $region11: #{tpu_custom_call.1} parent=1 // pred_check_branch
      %37 = sbr.rel (0) target = $region13
    $region12: #{tpu_custom_call.1} parent=1 // pred_region
      %s39 = ssub.s32 128, 128
      %40 = vsyncadd [#allocation8], %s39
      %s42 = sshll.u32 [#allocation9], 4
      %s43 = int_to_ptr.vmem [resolvable:$true] %s42
      %45 = dma.hbm_to_vmem [thread:$0]  %s3, 128, %s43, [#allocation8]
    $region13: #{tpu_custom_call.1} parent=1 // pred_fallthru
      _
    // Predicated region
    $region14: #{tpu_custom_call.1} parent=1 // pred_check
      _
    $region15: #{tpu_custom_call.1} parent=1 // pred_check_branch
      %47 = sbr.rel (0) target = $region17
    $region16: #{tpu_custom_call.1} parent=1 // pred_region
      %s49 = ssub.s32 128, 128
      %50 = vsyncadd [#allocation11], %s49
      %s52 = sshll.u32 [#allocation10], 4
      %s53 = int_to_ptr.vmem [resolvable:$true] %s52
      %55 = dma.hbm_to_vmem [thread:$0]  %s4, 128, %s53, [#allocation11]
    $region17: #{tpu_custom_call.1} parent=1 // pred_fallthru
      _
    // Predicated region
    $region18: #{tpu_custom_call.1} parent=1 // pred_check
      _
    $region19: #{tpu_custom_call.1} parent=1 // pred_check_branch
      %57 = sbr.rel (0) target = $region21
    $region20: #{tpu_custom_call.1} parent=1 // pred_region
      _
    $region21: #{tpu_custom_call.1} parent=1 // pred_fallthru
      _
    // Predicated region
    $region22: #{tpu_custom_call.1} parent=1 // pred_check
      _
    $region23: #{tpu_custom_call.1} parent=1 // pred_check_branch
      %59 = sbr.rel (0) target = $region25
    $region24: #{tpu_custom_call.1} parent=1 // pred_region
      %60 = dma.done [#allocation5], 128
    $region25: #{tpu_custom_call.1} parent=1 // pred_fallthru
      _
    // Predicated region
    $region26: #{tpu_custom_call.1} parent=1 // pred_check
      _
    $region27: #{tpu_custom_call.1} parent=1 // pred_check_branch
      %62 = sbr.rel (0) target = $region29
    $region28: #{tpu_custom_call.1} parent=1 // pred_region
      %63 = dma.done [#allocation8], 128
    $region29: #{tpu_custom_call.1} parent=1 // pred_fallthru
      _
    // Predicated region
    $region30: #{tpu_custom_call.1} parent=1 // pred_check
      _
    $region31: #{tpu_custom_call.1} parent=1 // pred_check_branch
      %65 = sbr.rel (0) target = $region33
    $region32: #{tpu_custom_call.1} parent=1 // pred_region
      %66 = dma.done [#allocation8], 128
    $region33: #{tpu_custom_call.1} parent=1 // pred_fallthru
      _
    // Predicated region
    $region34: #{tpu_custom_call.1} parent=1 // pred_check
      _
    $region35: #{tpu_custom_call.1} parent=1 // pred_check_branch
      %68 = sbr.rel (0) target = $region37
    $region36: #{tpu_custom_call.1} parent=1 // pred_region
      %69 = dma.done [#allocation11], 128
    $region37: #{tpu_custom_call.1} parent=1 // pred_fallthru
      _
    %v70 = vld [vmem:[#allocation4] sm:$0xff]
    %v71 = vld [vmem:[#allocation7] sm:$0xff]
    %v72 = vld [vmem:[#allocation9] sm:$0xff]
    %v73 = vld [vmem:[#allocation10] sm:$0xff]
    %v74 = vld [vmem:[%s5] sm:$0xff]
    %v75 = vmul.f32 %v71, 1.442695
    %v76 = vpow.pop %v75
    %v77 = vmul.f32 %v76, %v73
    %v78 = vadd.f32 %v70, %v77
    %v79 = vadd.f32 %v74, 1e-12
    %v80 = vlog2.pop %v79
    %v81 = vmul.f32 %v80, 0.6931472
    %v82 = vsub.f32 0.0, %v81
    %v83 = vadd.f32 %v82, 1e-12
    %v84 = vlog2.pop %v83
    %v85 = vmul.f32 %v84, 0.6931472
    %v86 = vsub.f32 0.0, %v85
    %s87 = sld [smem:[#allocation3]]
    %v88 = vstv %s87
    %v89 = vrcp.pop %v88
    %s90 = vtos %v89
    %v91 = vadd.f32 %v72, %v86
    %v92 = vstv %s90
    %v93 = vmul.f32 %v91, %v92
    %vm94 = vcmask 130048
    %v95 = vsel %vm94, %v93, -inf
    %96 = vmax.xlane.f32.xlu0 %v95
    %v97 = vpop.xlane.xlu0 %96
    %v98 = vsub.f32 %v93, %v97
    %v99 = vmul.f32 %v98, 1.442695
    %v100 = vpow.pop %v99
    %v101 = vsel %vm94, %v100, 0.0
    %102 = vadd.xlane.f32.xlu0 %v101
    %v103 = vpop.xlane.xlu0 %102
    %v104 = vrcp.pop %v103
    %v105 = vmul.f32 %v100, %v104
    %vm106 = vcmask 261120
    %107 = vst.msk [vmem:[#allocation12] sm:$0xff] %vm106, %v78
    %109 = vrot.lane.b32.xlu0 %v105, 32
    %v110 = vpop.permute.xlu0 %109
    %vm112 = vcmask 392448
    %113 = vst.msk [vmem:[#allocation12] sm:$0xff] %vm112, %v110
    // Predicated region
    $region38: #{tpu_custom_call.1} parent=1 // pred_check
      _
    $region39: #{tpu_custom_call.1} parent=1 // pred_check_branch
      %115 = sbr.rel (0) target = $region41
    $region40: #{tpu_custom_call.1} parent=1 // pred_region
      %s117 = ssub.s32 128, 128
      %118 = vsyncadd [#allocation6], %s117
      %s120 = sshll.u32 [#allocation12], 4
      %s121 = int_to_ptr.vmem [resolvable:$true] %s120
      %123 = dma.vmem_to_hbm [thread:$0]  %s121, 128, %s6, [#allocation6]
    $region41: #{tpu_custom_call.1} parent=1 // pred_fallthru
      _
    // Predicated region
    $region42: #{tpu_custom_call.1} parent=1 // pred_check
      _
    $region43: #{tpu_custom_call.1} parent=1 // pred_check_branch
      %125 = sbr.rel (0) target = $region45
    $region44: #{tpu_custom_call.1} parent=1 // pred_region
      %126 = dma.done [#allocation6], 128
    $region45: #{tpu_custom_call.1} parent=1 // pred_fallthru
      _
    %127 = vsyncpa [#allocation5], 1
    %128 = vsyncpa [#allocation8], 1
    %129 = vsyncpa [#allocation11], 1
    %130 = vsyncpa [#allocation6], 1

</llo_original>
